<compile_context>
chip_gen: v7x
topology: tpu7x:2x2x1
jax: 0.10.0
libtpu: 0.0.40
codegen_flags: <defaults>
</compile_context>

<pallas_src>
import functools

import jax
import jax.numpy as jnp
from jax.experimental import pallas as pl
from jax.experimental.pallas import tpu as pltpu

LANE = 128      # vreg lane width (also v5e MXU tile; fine as multiple for v6e/v7x)
SUBLANE = 8     # vreg sublane count (f32)


def _round_up(x, m):
    return (x + m - 1) // m * m


def fcn_kernel(x_ref, *refs, num_linear):
    """Fused MLP forward on one batch tile: ReLU after every linear but the last."""
    out_ref = refs[-1]
    wb_refs = refs[:-1]                       # w0, b0, w1, b1, ..., w_{L-1}, b_{L-1}
    h = x_ref[...]
    for i in range(num_linear):
        w = wb_refs[2 * i][...]
        b = wb_refs[2 * i + 1][...]
        # MXU matmul with f32 accumulation; bias add + ReLU in f32 on the VPU.
        h = jnp.dot(h, w, preferred_element_type=jnp.float32) + b.astype(jnp.float32)
        if i < num_linear - 1:
            h = jnp.maximum(h, 0.0)
            h = h.astype(w.dtype)             # feed next matmul in param dtype (bf16-friendly)
    out_ref[...] = h.astype(out_ref.dtype)


def init_fcn_params(key, n_input, n_output, n_hidden, n_layers):
    """Deterministic init mirroring the torch module's layer shapes."""
    dims = [n_input] + [n_hidden] * n_layers + [n_output]
    weights, biases = [], []
    for i in range(len(dims) - 1):
        key, kw, kb = jax.random.split(key, 3)
        bound = 1.0 / jnp.sqrt(dims[i])
        # (in, out) layout so the kernel computes x @ W directly (== torch x @ W.T).
        w = jax.random.uniform(kw, (dims[i], dims[i + 1]), jnp.float32,
                               minval=-bound, maxval=bound)
        b = jax.random.uniform(kb, (1, dims[i + 1]), jnp.float32,
                               minval=-bound, maxval=bound)
        weights.append(w)
        biases.append(b)
    return weights, biases


def prepare_fcn_params(weights, biases, param_dtype=jnp.float32):
    """One-time parameter padding (hoisted out of the per-call forward path).

    Hidden feature dims are zero-padded to 128 lanes (lane-dense vld, full MXU
    lanes); the input and the final output feature dims stay UNPADDED so x and
    the output never pay per-call pad copies or 128x writeback. Zero-padded
    weight rows/cols + zero bias lanes keep padded activation lanes at exactly
    0 through bias-add + ReLU, so the math is unchanged.
    Returns (padded_params_flat [w0,b0,w1,b1,...], pdims).
    """
    n_in = weights[0].shape[0]
    dims = [n_in] + [w.shape[1] for w in weights]
    pdims = [dims[0]] + [_round_up(d, LANE) for d in dims[1:-1]] + [dims[-1]]
    padded = []
    for i, (w, b) in enumerate(zip(weights, biases)):
        pin, pout = pdims[i], pdims[i + 1]
        w_p = (jnp.zeros((pin, pout), param_dtype)
               .at[:w.shape[0], :w.shape[1]].set(w.astype(param_dtype)))
        b_p = (jnp.zeros((1, pout), jnp.float32)
               .at[:, :b.shape[1]].set(b.astype(jnp.float32)))
        padded += [w_p, b_p]
    return padded, tuple(pdims)


def _param_specs(padded_params, single_buffer):
    """Constant index_map -> params DMA'd once and VMEM-resident across batch steps.
    single_buffer=True requests 1-deep buffering (no point double-buffering a
    constant block; halves resident param VMEM, important on v7x's 64 MiB)."""
    kw = {"pipeline_mode": pl.Buffered(1)} if single_buffer else {}
    return [pl.BlockSpec(p.shape, lambda i: (0, 0), **kw) for p in padded_params]


def fcn_forward(x, padded_params, pdims, *, block_rows=1024):
    """x: (B, n_in) f32/bf16. padded_params/pdims from prepare_fcn_params.
    Returns (B, n_out) f32."""
    B, n_in = x.shape
    assert n_in == pdims[0], "x feature dim must match prepared params"
    num_linear = len(pdims) - 1
    n_out = pdims[-1]
    max_pdim = max(pdims)
    param_dtype = padded_params[0].dtype
    itemsize = jnp.dtype(param_dtype).itemsize

    # ---- batch tile: multiple of 8 sublanes; ensure grid >= 2 when B allows so
    # ---- the "parallel" batch axis actually shards across v7x's 2 TensorCores.
    tm = min(_round_up(block_rows, SUBLANE), _round_up(B, SUBLANE))
    if B > SUBLANE and pl.cdiv(B, tm) < 2:
        tm = _round_up(pl.cdiv(B, 2), SUBLANE)
    b_pad = _round_up(B, tm)
    grid = (b_pad // tm,)

    # Only the batch dim is (cheaply) padded; feature dims stay as-is.
    x_in = x.astype(param_dtype)
    if b_pad != B:
        x_in = jnp.zeros((b_pad, n_in), param_dtype).at[:B].set(x_in)

    in_specs_x = [pl.BlockSpec((tm, n_in), lambda i: (i, 0))]
    out_spec = pl.BlockSpec((tm, n_out), lambda i: (i, 0))
    out_shape = jax.ShapeDtypeStruct((b_pad, n_out), jnp.float32)

    # ---- cost estimate (helps XLA schedule around the custom call) ----
    param_bytes = sum(int(p.size) * p.dtype.itemsize for p in padded_params)
    flops = 2 * b_pad * sum(pdims[i] * pdims[i + 1] for i in range(num_linear))
    bytes_accessed = (b_pad * n_in * itemsize + param_bytes + b_pad * n_out * 4)
    cost = pl.CostEstimate(flops=flops, transcendentals=0,
                           bytes_accessed=bytes_accessed)

    # ---- VMEM budget: x/out tiles (double-buffered), resident params, and the
    # ---- live intermediate activation kept across the unrolled layer loop.
    def vmem_needed(param_buf_factor):
        return (2 * tm * n_in * itemsize
                + 2 * tm * n_out * 4
                + param_buf_factor * param_bytes
                + 2 * tm * max_pdim * 4)

    # Generation-aware VMEM ceiling with ~12% headroom for compiler scratch.
    try:
        vmem_phys = pltpu.get_tpu_info().vmem_capacity_bytes
    except Exception:
        vmem_phys = 64 * 1024 * 1024
    vmem_cap = vmem_phys * 7 // 8

    if vmem_needed(1) > vmem_cap:
        # TODO(synk): add a tiling fallback (second grid axis over the widest
        # layer's output dim, or per-layer pallas_calls) for configs whose
        # resident params exceed this generation's VMEM (notably v7x's 64 MiB).
        raise ValueError("FCN parameters do not fit VMEM-resident on this TPU "
                         f"generation (need {vmem_needed(1)} B, cap {vmem_cap} B).")

    def compiler_params(need):
        kw = dict(dimension_semantics=("parallel",))
        if need > 32 * 1024 * 1024:
            kw["vmem_limit_bytes"] = min(int(need * 5 // 4), int(vmem_cap))
        return pltpu.CompilerParams(**kw)

    def call(single_buffer):
        need = vmem_needed(1 if single_buffer else 2)
        return pl.pallas_call(
            functools.partial(fcn_kernel, num_linear=num_linear),
            out_shape=out_shape,
            grid=grid,
            in_specs=in_specs_x + _param_specs(padded_params, single_buffer),
            out_specs=out_spec,
            cost_estimate=cost,
            compiler_params=compiler_params(need),
        )(x_in, *padded_params)

    try:
        out = call(single_buffer=True)
    except Exception:
        # Fallback if this Pallas build rejects Buffered(1) on resident params.
        out = call(single_buffer=False)

    return out[:B] if b_pad != B else out


def fcn_reference(x, weights, biases):
    h = x
    for i, (w, b) in enumerate(zip(weights, biases)):
        h = h @ w + b
        if i < len(weights) - 1:
            h = jnp.maximum(h, 0.0)
    return h


if __name__ == "__main__":
    N_INPUT, N_OUTPUT, N_HIDDEN, N_LAYERS = 16, 1, 32, 3

    key = jax.random.PRNGKey(0)
    weights, biases = init_fcn_params(key, N_INPUT, N_OUTPUT, N_HIDDEN, N_LAYERS)

    # One-time parameter padding (hoisted out of the forward path).
    params_f32, pdims = prepare_fcn_params(weights, biases, jnp.float32)
    params_bf16, _ = prepare_fcn_params(weights, biases, jnp.bfloat16)

    # Small demo batch (single grid step), exact f32 check.
    key, kx = jax.random.split(key)
    x_small = jax.random.normal(kx, (8, N_INPUT), jnp.float32)
    out_small = jax.block_until_ready(fcn_forward(x_small, params_f32, pdims))
    ref_small = fcn_reference(x_small, weights, biases)
    assert out_small.shape == (8, N_OUTPUT)
    assert jnp.allclose(out_small, ref_small, atol=1e-5, rtol=1e-5)

    # Larger batch exercising batch tiling / padding (grid > 1).
    key, kx2 = jax.random.split(key)
    x_big = jax.random.normal(kx2, (300, N_INPUT), jnp.float32)
    out_big = jax.block_until_ready(
        fcn_forward(x_big, params_f32, pdims, block_rows=128))
    ref_big = fcn_reference(x_big, weights, biases)
    assert out_big.shape == (300, N_OUTPUT)
    assert jnp.allclose(out_big, ref_big, atol=1e-5, rtol=1e-5)

    # bf16 perf path (half the param/x HBM traffic, f32 MXU accumulation);
    # default block_rows -> grid split across 2 tiles for v7x's two TCs.
    out_bf16 = jax.block_until_ready(fcn_forward(x_big, params_bf16, pdims))
    assert out_bf16.shape == (300, N_OUTPUT)
    assert jnp.allclose(out_bf16, ref_big, atol=5e-2, rtol=5e-2)

    print("KERNEL_OK")
</pallas_src>

<mosaic_0001>
module attributes {stable_mosaic.version = 11 : i64} {
  func.func @fcn_kernel(%arg0: i32, %arg1: memref<8x16xf32, #tpu.memory_space<vmem>>, %arg2: memref<16x128xf32, #tpu.memory_space<vmem>>, %arg3: memref<1x128xf32, #tpu.memory_space<vmem>>, %arg4: memref<128x128xf32, #tpu.memory_space<vmem>>, %arg5: memref<1x128xf32, #tpu.memory_space<vmem>>, %arg6: memref<128x128xf32, #tpu.memory_space<vmem>>, %arg7: memref<1x128xf32, #tpu.memory_space<vmem>>, %arg8: memref<128x1xf32, #tpu.memory_space<vmem>>, %arg9: memref<1x1xf32, #tpu.memory_space<vmem>>, %arg10: memref<8x1xf32, #tpu.memory_space<vmem>>) attributes {dimension_semantics = [#tpu.dimension_semantics<parallel>], iteration_bounds = array<i64: 1>, scalar_prefetch = 0 : i64, scratch_operands = 0 : i64, tpu.core_type = #tpu.core_type<tc>, window_params = [{transform_indices = @transform_0, window_bounds = array<i64: 8, 16>}, {pipeline_mode = #tpu.pipeline_mode<synchronous>, transform_indices = @transform_1, window_bounds = array<i64: 16, 128>}, {pipeline_mode = #tpu.pipeline_mode<synchronous>, transform_indices = @transform_2, window_bounds = array<i64: 1, 128>}, {pipeline_mode = #tpu.pipeline_mode<synchronous>, transform_indices = @transform_3, window_bounds = array<i64: 128, 128>}, {pipeline_mode = #tpu.pipeline_mode<synchronous>, transform_indices = @transform_4, window_bounds = array<i64: 1, 128>}, {pipeline_mode = #tpu.pipeline_mode<synchronous>, transform_indices = @transform_5, window_bounds = array<i64: 128, 128>}, {pipeline_mode = #tpu.pipeline_mode<synchronous>, transform_indices = @transform_6, window_bounds = array<i64: 1, 128>}, {pipeline_mode = #tpu.pipeline_mode<synchronous>, transform_indices = @transform_7, window_bounds = array<i64: 128, 1>}, {pipeline_mode = #tpu.pipeline_mode<synchronous>, transform_indices = @transform_8, window_bounds = array<i64: 1, 1>}, {transform_indices = @transform_9, window_bounds = array<i64: 8, 1>}]} {
    %c0 = arith.constant 0 : index
    %c0_0 = arith.constant 0 : index
    %0 = vector.load %arg1[%c0, %c0_0] : memref<8x16xf32, #tpu.memory_space<vmem>>, vector<8x16xf32>
    %c0_1 = arith.constant 0 : index
    %c0_2 = arith.constant 0 : index
    %1 = vector.load %arg2[%c0_1, %c0_2] : memref<16x128xf32, #tpu.memory_space<vmem>>, vector<16x128xf32>
    %c0_3 = arith.constant 0 : index
    %c0_4 = arith.constant 0 : index
    %2 = vector.load %arg3[%c0_3, %c0_4] : memref<1x128xf32, #tpu.memory_space<vmem>>, vector<1x128xf32>
    %cst = arith.constant dense<0.000000e+00> : vector<8x128xf32>
    %3 = tpu.matmul %0, %1, %cst {dimension_numbers = #tpu.dot_dimension_numbers<[1], [0], [0], [1], [0, 0, 1, 1], [], []>} : vector<8x16xf32>, vector<16x128xf32>, vector<8x128xf32> -> vector<8x128xf32>
    %4 = vector.broadcast %2 : vector<1x128xf32> to vector<8x128xf32>
    %5 = arith.addf %3, %4 : vector<8x128xf32>
    %cst_5 = arith.constant 0.000000e+00 : f32
    %6 = vector.broadcast %cst_5 : f32 to vector<8x128xf32>
    %7 = arith.maximumf %5, %6 : vector<8x128xf32>
    %c0_6 = arith.constant 0 : index
    %c0_7 = arith.constant 0 : index
    %8 = vector.load %arg4[%c0_6, %c0_7] : memref<128x128xf32, #tpu.memory_space<vmem>>, vector<128x128xf32>
    %c0_8 = arith.constant 0 : index
    %c0_9 = arith.constant 0 : index
    %9 = vector.load %arg5[%c0_8, %c0_9] : memref<1x128xf32, #tpu.memory_space<vmem>>, vector<1x128xf32>
    %cst_10 = arith.constant dense<0.000000e+00> : vector<8x128xf32>
    %10 = tpu.matmul %7, %8, %cst_10 {dimension_numbers = #tpu.dot_dimension_numbers<[1], [0], [0], [1], [0, 0, 1, 1], [], []>} : vector<8x128xf32>, vector<128x128xf32>, vector<8x128xf32> -> vector<8x128xf32>
    %11 = vector.broadcast %9 : vector<1x128xf32> to vector<8x128xf32>
    %12 = arith.addf %10, %11 : vector<8x128xf32>
    %cst_11 = arith.constant 0.000000e+00 : f32
    %13 = vector.broadcast %cst_11 : f32 to vector<8x128xf32>
    %14 = arith.maximumf %12, %13 : vector<8x128xf32>
    %c0_12 = arith.constant 0 : index
    %c0_13 = arith.constant 0 : index
    %15 = vector.load %arg6[%c0_12, %c0_13] : memref<128x128xf32, #tpu.memory_space<vmem>>, vector<128x128xf32>
    %c0_14 = arith.constant 0 : index
    %c0_15 = arith.constant 0 : index
    %16 = vector.load %arg7[%c0_14, %c0_15] : memref<1x128xf32, #tpu.memory_space<vmem>>, vector<1x128xf32>
    %cst_16 = arith.constant dense<0.000000e+00> : vector<8x128xf32>
    %17 = tpu.matmul %14, %15, %cst_16 {dimension_numbers = #tpu.dot_dimension_numbers<[1], [0], [0], [1], [0, 0, 1, 1], [], []>} : vector<8x128xf32>, vector<128x128xf32>, vector<8x128xf32> -> vector<8x128xf32>
    %18 = vector.broadcast %16 : vector<1x128xf32> to vector<8x128xf32>
    %19 = arith.addf %17, %18 : vector<8x128xf32>
    %cst_17 = arith.constant 0.000000e+00 : f32
    %20 = vector.broadcast %cst_17 : f32 to vector<8x128xf32>
    %21 = arith.maximumf %19, %20 : vector<8x128xf32>
    %c0_18 = arith.constant 0 : index
    %c0_19 = arith.constant 0 : index
    %22 = vector.load %arg8[%c0_18, %c0_19] : memref<128x1xf32, #tpu.memory_space<vmem>>, vector<128x1xf32>
    %c0_20 = arith.constant 0 : index
    %c0_21 = arith.constant 0 : index
    %23 = vector.load %arg9[%c0_20, %c0_21] : memref<1x1xf32, #tpu.memory_space<vmem>>, vector<1x1xf32>
    %cst_22 = arith.constant dense<0.000000e+00> : vector<8x1xf32>
    %24 = tpu.matmul %21, %22, %cst_22 {dimension_numbers = #tpu.dot_dimension_numbers<[1], [0], [0], [1], [0, 0, 1, 1], [], []>} : vector<8x128xf32>, vector<128x1xf32>, vector<8x1xf32> -> vector<8x1xf32>
    %25 = vector.broadcast %23 : vector<1x1xf32> to vector<8x1xf32>
    %26 = arith.addf %24, %25 : vector<8x1xf32>
    %c0_23 = arith.constant 0 : index
    %c0_24 = arith.constant 0 : index
    %27 = vector.load %arg10[%c0_23, %c0_24] : memref<8x1xf32, #tpu.memory_space<vmem>>, vector<8x1xf32>
    tpu.vector_store %arg10[%c0_23, %c0_24], %26 {strides = array<i32>} : memref<8x1xf32, #tpu.memory_space<vmem>>, vector<8x1xf32>,
    return
  }
  func.func @transform_0(%arg0: i32) -> (i32, i32) {
    %c0_i32 = arith.constant 0 : i32
    %c0_i32_0 = arith.constant 0 : i32
    return %arg0, %c0_i32 : i32, i32
  }
  func.func @transform_1(%arg0: i32) -> (i32, i32) {
    %c0_i32 = arith.constant 0 : i32
    %c0_i32_0 = arith.constant 0 : i32
    %c0_i32_1 = arith.constant 0 : i32
    return %c0_i32, %c0_i32_0 : i32, i32
  }
  func.func @transform_2(%arg0: i32) -> (i32, i32) {
    %c0_i32 = arith.constant 0 : i32
    %c0_i32_0 = arith.constant 0 : i32
    %c0_i32_1 = arith.constant 0 : i32
    return %c0_i32, %c0_i32_0 : i32, i32
  }
  func.func @transform_3(%arg0: i32) -> (i32, i32) {
    %c0_i32 = arith.constant 0 : i32
    %c0_i32_0 = arith.constant 0 : i32
    %c0_i32_1 = arith.constant 0 : i32
    return %c0_i32, %c0_i32_0 : i32, i32
  }
  func.func @transform_4(%arg0: i32) -> (i32, i32) {
    %c0_i32 = arith.constant 0 : i32
    %c0_i32_0 = arith.constant 0 : i32
    %c0_i32_1 = arith.constant 0 : i32
    return %c0_i32, %c0_i32_0 : i32, i32
  }
  func.func @transform_5(%arg0: i32) -> (i32, i32) {
    %c0_i32 = arith.constant 0 : i32
    %c0_i32_0 = arith.constant 0 : i32
    %c0_i32_1 = arith.constant 0 : i32
    return %c0_i32, %c0_i32_0 : i32, i32
  }
  func.func @transform_6(%arg0: i32) -> (i32, i32) {
    %c0_i32 = arith.constant 0 : i32
    %c0_i32_0 = arith.constant 0 : i32
    %c0_i32_1 = arith.constant 0 : i32
    return %c0_i32, %c0_i32_0 : i32, i32
  }
  func.func @transform_7(%arg0: i32) -> (i32, i32) {
    %c0_i32 = arith.constant 0 : i32
    %c0_i32_0 = arith.constant 0 : i32
    %c0_i32_1 = arith.constant 0 : i32
    return %c0_i32, %c0_i32_0 : i32, i32
  }
  func.func @transform_8(%arg0: i32) -> (i32, i32) {
    %c0_i32 = arith.constant 0 : i32
    %c0_i32_0 = arith.constant 0 : i32
    %c0_i32_1 = arith.constant 0 : i32
    return %c0_i32, %c0_i32_0 : i32, i32
  }
  func.func @transform_9(%arg0: i32) -> (i32, i32) {
    %c0_i32 = arith.constant 0 : i32
    %c0_i32_0 = arith.constant 0 : i32
    return %arg0, %c0_i32 : i32, i32
  }
}

module attributes {stable_mosaic.version = 11 : i64} {
  func.func @fcn_kernel(%arg0: i32, %arg1: memref<8x16xf32, #tpu.memory_space<vmem>>, %arg2: memref<16x128xf32, #tpu.memory_space<vmem>>, %arg3: memref<1x128xf32, #tpu.memory_space<vmem>>, %arg4: memref<128x128xf32, #tpu.memory_space<vmem>>, %arg5: memref<1x128xf32, #tpu.memory_space<vmem>>, %arg6: memref<128x128xf32, #tpu.memory_space<vmem>>, %arg7: memref<1x128xf32, #tpu.memory_space<vmem>>, %arg8: memref<128x1xf32, #tpu.memory_space<vmem>>, %arg9: memref<1x1xf32, #tpu.memory_space<vmem>>, %arg10: memref<8x1xf32, #tpu.memory_space<vmem>>) attributes {dimension_semantics = [#tpu.dimension_semantics<parallel>], iteration_bounds = array<i64: 1>, scalar_prefetch = 0 : i64, scratch_operands = 0 : i64, tpu.core_type = #tpu.core_type<tc>, window_params = [{transform_indices = @transform_0, window_bounds = array<i64: 8, 16>}, {pipeline_mode = #tpu.pipeline_mode<synchronous>, transform_indices = @transform_1, window_bounds = array<i64: 16, 128>}, {pipeline_mode = #tpu.pipeline_mode<synchronous>, transform_indices = @transform_2, window_bounds = array<i64: 1, 128>}, {pipeline_mode = #tpu.pipeline_mode<synchronous>, transform_indices = @transform_3, window_bounds = array<i64: 128, 128>}, {pipeline_mode = #tpu.pipeline_mode<synchronous>, transform_indices = @transform_4, window_bounds = array<i64: 1, 128>}, {pipeline_mode = #tpu.pipeline_mode<synchronous>, transform_indices = @transform_5, window_bounds = array<i64: 128, 128>}, {pipeline_mode = #tpu.pipeline_mode<synchronous>, transform_indices = @transform_6, window_bounds = array<i64: 1, 128>}, {pipeline_mode = #tpu.pipeline_mode<synchronous>, transform_indices = @transform_7, window_bounds = array<i64: 128, 1>}, {pipeline_mode = #tpu.pipeline_mode<synchronous>, transform_indices = @transform_8, window_bounds = array<i64: 1, 1>}, {transform_indices = @transform_9, window_bounds = array<i64: 8, 1>}]} {
    %c0 = arith.constant 0 : index
    %c0_0 = arith.constant 0 : index
    %0 = vector.load %arg1[%c0, %c0_0] : memref<8x16xf32, #tpu.memory_space<vmem>>, vector<8x16xf32>
    %c0_1 = arith.constant 0 : index
    %c0_2 = arith.constant 0 : index
    %1 = vector.load %arg2[%c0_1, %c0_2] : memref<16x128xf32, #tpu.memory_space<vmem>>, vector<16x128xf32>
    %c0_3 = arith.constant 0 : index
    %c0_4 = arith.constant 0 : index
    %2 = vector.load %arg3[%c0_3, %c0_4] : memref<1x128xf32, #tpu.memory_space<vmem>>, vector<1x128xf32>
    %cst = arith.constant dense<0.000000e+00> : vector<8x128xf32>
    %3 = tpu.matmul %0, %1, %cst {dimension_numbers = #tpu.dot_dimension_numbers<[1], [0], [0], [1], [0, 0, 1, 1], [], []>} : vector<8x16xf32>, vector<16x128xf32>, vector<8x128xf32> -> vector<8x128xf32>
    %4 = vector.broadcast %2 : vector<1x128xf32> to vector<8x128xf32>
    %5 = arith.addf %3, %4 : vector<8x128xf32>
    %cst_5 = arith.constant 0.000000e+00 : f32
    %6 = vector.broadcast %cst_5 : f32 to vector<8x128xf32>
    %7 = arith.maximumf %5, %6 : vector<8x128xf32>
    %c0_6 = arith.constant 0 : index
    %c0_7 = arith.constant 0 : index
    %8 = vector.load %arg4[%c0_6, %c0_7] : memref<128x128xf32, #tpu.memory_space<vmem>>, vector<128x128xf32>
    %c0_8 = arith.constant 0 : index
    %c0_9 = arith.constant 0 : index
    %9 = vector.load %arg5[%c0_8, %c0_9] : memref<1x128xf32, #tpu.memory_space<vmem>>, vector<1x128xf32>
    %cst_10 = arith.constant dense<0.000000e+00> : vector<8x128xf32>
    %10 = tpu.matmul %7, %8, %cst_10 {dimension_numbers = #tpu.dot_dimension_numbers<[1], [0], [0], [1], [0, 0, 1, 1], [], []>} : vector<8x128xf32>, vector<128x128xf32>, vector<8x128xf32> -> vector<8x128xf32>
    %11 = vector.broadcast %9 : vector<1x128xf32> to vector<8x128xf32>
    %12 = arith.addf %10, %11 : vector<8x128xf32>
    %cst_11 = arith.constant 0.000000e+00 : f32
    %13 = vector.broadcast %cst_11 : f32 to vector<8x128xf32>
    %14 = arith.maximumf %12, %13 : vector<8x128xf32>
    %c0_12 = arith.constant 0 : index
    %c0_13 = arith.constant 0 : index
    %15 = vector.load %arg6[%c0_12, %c0_13] : memref<128x128xf32, #tpu.memory_space<vmem>>, vector<128x128xf32>
    %c0_14 = arith.constant 0 : index
    %c0_15 = arith.constant 0 : index
    %16 = vector.load %arg7[%c0_14, %c0_15] : memref<1x128xf32, #tpu.memory_space<vmem>>, vector<1x128xf32>
    %cst_16 = arith.constant dense<0.000000e+00> : vector<8x128xf32>
    %17 = tpu.matmul %14, %15, %cst_16 {dimension_numbers = #tpu.dot_dimension_numbers<[1], [0], [0], [1], [0, 0, 1, 1], [], []>} : vector<8x128xf32>, vector<128x128xf32>, vector<8x128xf32> -> vector<8x128xf32>
    %18 = vector.broadcast %16 : vector<1x128xf32> to vector<8x128xf32>
    %19 = arith.addf %17, %18 : vector<8x128xf32>
    %cst_17 = arith.constant 0.000000e+00 : f32
    %20 = vector.broadcast %cst_17 : f32 to vector<8x128xf32>
    %21 = arith.maximumf %19, %20 : vector<8x128xf32>
    %c0_18 = arith.constant 0 : index
    %c0_19 = arith.constant 0 : index
    %22 = vector.load %arg8[%c0_18, %c0_19] : memref<128x1xf32, #tpu.memory_space<vmem>>, vector<128x1xf32>
    %c0_20 = arith.constant 0 : index
    %c0_21 = arith.constant 0 : index
    %23 = vector.load %arg9[%c0_20, %c0_21] : memref<1x1xf32, #tpu.memory_space<vmem>>, vector<1x1xf32>
    %cst_22 = arith.constant dense<0.000000e+00> : vector<8x1xf32>
    %24 = tpu.matmul %21, %22, %cst_22 {dimension_numbers = #tpu.dot_dimension_numbers<[1], [0], [0], [1], [0, 0, 1, 1], [], []>} : vector<8x128xf32>, vector<128x1xf32>, vector<8x1xf32> -> vector<8x1xf32>
    %25 = vector.broadcast %23 : vector<1x1xf32> to vector<8x1xf32>
    %26 = arith.addf %24, %25 : vector<8x1xf32>
    %c0_23 = arith.constant 0 : index
    %c0_24 = arith.constant 0 : index
    %27 = vector.load %arg10[%c0_23, %c0_24] : memref<8x1xf32, #tpu.memory_space<vmem>>, vector<8x1xf32>
    tpu.vector_store %arg10[%c0_23, %c0_24], %26 {strides = array<i32>} : memref<8x1xf32, #tpu.memory_space<vmem>>, vector<8x1xf32>,
    return
  }
  func.func @transform_0(%arg0: i32) -> (i32, i32) {
    %c0_i32 = arith.constant 0 : i32
    %c0_i32_0 = arith.constant 0 : i32
    return %arg0, %c0_i32 : i32, i32
  }
  func.func @transform_1(%arg0: i32) -> (i32, i32) {
    %c0_i32 = arith.constant 0 : i32
    %c0_i32_0 = arith.constant 0 : i32
    %c0_i32_1 = arith.constant 0 : i32
    return %c0_i32, %c0_i32_0 : i32, i32
  }
  func.func @transform_2(%arg0: i32) -> (i32, i32) {
    %c0_i32 = arith.constant 0 : i32
    %c0_i32_0 = arith.constant 0 : i32
    %c0_i32_1 = arith.constant 0 : i32
    return %c0_i32, %c0_i32_0 : i32, i32
  }
  func.func @transform_3(%arg0: i32) -> (i32, i32) {
    %c0_i32 = arith.constant 0 : i32
    %c0_i32_0 = arith.constant 0 : i32
    %c0_i32_1 = arith.constant 0 : i32
    return %c0_i32, %c0_i32_0 : i32, i32
  }
  func.func @transform_4(%arg0: i32) -> (i32, i32) {
    %c0_i32 = arith.constant 0 : i32
    %c0_i32_0 = arith.constant 0 : i32
    %c0_i32_1 = arith.constant 0 : i32
    return %c0_i32, %c0_i32_0 : i32, i32
  }
  func.func @transform_5(%arg0: i32) -> (i32, i32) {
    %c0_i32 = arith.constant 0 : i32
    %c0_i32_0 = arith.constant 0 : i32
    %c0_i32_1 = arith.constant 0 : i32
    return %c0_i32, %c0_i32_0 : i32, i32
  }
  func.func @transform_6(%arg0: i32) -> (i32, i32) {
    %c0_i32 = arith.constant 0 : i32
    %c0_i32_0 = arith.constant 0 : i32
    %c0_i32_1 = arith.constant 0 : i32
    return %c0_i32, %c0_i32_0 : i32, i32
  }
  func.func @transform_7(%arg0: i32) -> (i32, i32) {
    %c0_i32 = arith.constant 0 : i32
    %c0_i32_0 = arith.constant 0 : i32
    %c0_i32_1 = arith.constant 0 : i32
    return %c0_i32, %c0_i32_0 : i32, i32
  }
  func.func @transform_8(%arg0: i32) -> (i32, i32) {
    %c0_i32 = arith.constant 0 : i32
    %c0_i32_0 = arith.constant 0 : i32
    %c0_i32_1 = arith.constant 0 : i32
    return %c0_i32, %c0_i32_0 : i32, i32
  }
  func.func @transform_9(%arg0: i32) -> (i32, i32) {
    %c0_i32 = arith.constant 0 : i32
    %c0_i32_0 = arith.constant 0 : i32
    return %arg0, %c0_i32 : i32, i32
  }
}

</mosaic_0001>

<llo_original>
// kernel: tpu_custom_call.1
$region0: #{tpu_custom_call.1}
  #allocation0 [shape = 'u32[]', space=smem, size = 0x4, offset = 0x4, fixed_abs, tag = 'smem constant byte address 0x4 - core index']
  #allocation1 [shape = 'u32[144,128]{1,0:T(1,128)}', space=vmem, size = 0x12000, scoped, tag = 'internal scratch']
  #allocation2 [shape = 'f32[1,1]{1,0:T(1,128)S(1)}', space=vmem, size = 0x200, scoped, tag = 'scoped memory for tpu_custom_call.1']
  %s0 = inlined_call_operand.hbm [shape: f32[8,16], index: 0, kind: input, shape index: {}]
  %s1 = inlined_call_operand.vmem [shape: f32[16,128], index: 1, kind: input, shape index: {}]
  %s2 = inlined_call_operand.hbm [shape: f32[1,128], index: 2, kind: input, shape index: {}]
  %s3 = inlined_call_operand.vmem [shape: f32[128,128], index: 3, kind: input, shape index: {}]
  %s4 = inlined_call_operand.vmem [shape: f32[1,128], index: 4, kind: input, shape index: {}]
  %s5 = inlined_call_operand.hbm [shape: f32[128,128], index: 5, kind: input, shape index: {}]
  %s6 = inlined_call_operand.vmem [shape: f32[1,128], index: 6, kind: input, shape index: {}]
  %s7 = inlined_call_operand.vmem [shape: f32[128,1], index: 7, kind: input, shape index: {}]
  %s8 = inlined_call_operand.<no memory space> [shape: f32[1,1], index: 8, kind: input, shape index: {}]
  %s9 = inlined_call_operand.vmem [shape: f32[8,1], index: 9, kind: output, shape index: {}]
  %s10 = sld [smem:[#allocation0]]
  $region58: #{tpu_custom_call.1} parent=0
    _
  %s12 = ssub.s32 1, %s10
  %s13 = scalar_select 0, %s12, %s10
  %v14 = vstv %s8
  %15 = vst [vmem:[#allocation2] sm:$0x1] %v14
  $region1: #{tpu_custom_call.1} parent=0
    #allocation3 [shape = 'u8[4096]{0}', space=vmem, size = 0x1000, scoped, tag = 'input window, operand 0, single buffered']
    #allocation4 [shape = 's32[1]{0}', space=sflag, size = 0x4, scoped, tag = 'scoped memory for tpu_custom_call.1']
    #allocation5 [shape = 'u8[512]{0}', space=vmem, size = 0x400, scoped, tag = 'input window, operand 2, single buffered']
    #allocation6 [shape = 's32[1]{0}', space=sflag, size = 0x4, scoped, tag = 'scoped memory for tpu_custom_call.1']
    #allocation7 [shape = 'u8[65536]{0}', space=vmem, size = 0x10000, scoped, tag = 'input window, operand 5, single buffered']
    %16 = vsyncpa [#allocation4], 0
    %17 = vsyncpa [#allocation6], 0
    // Predicated region
    $region2: #{tpu_custom_call.1} parent=1 // pred_check
      _
    $region3: #{tpu_custom_call.1} parent=1 // pred_check_branch
      %19 = sbr.rel (0) target = $region5
    $region4: #{tpu_custom_call.1} parent=1 // pred_region
      %s21 = ssub.s32 128, 128
      %22 = vsyncadd [#allocation4], %s21
      %s24 = sshll.u32 [#allocation3], 4
      %s25 = int_to_ptr.vmem [resolvable:$true] %s24
      %27 = dma.hbm_to_vmem [thread:$0]  %s0, 128, %s25, [#allocation4]
    $region5: #{tpu_custom_call.1} parent=1 // pred_fallthru
      _
    // Predicated region
    $region6: #{tpu_custom_call.1} parent=1 // pred_check
      _
    $region7: #{tpu_custom_call.1} parent=1 // pred_check_branch
      %29 = sbr.rel (0) target = $region9
    $region8: #{tpu_custom_call.1} parent=1 // pred_region
      _
    $region9: #{tpu_custom_call.1} parent=1 // pred_fallthru
      _
    // Predicated region
    $region10: #{tpu_custom_call.1} parent=1 // pred_check
      _
    $region11: #{tpu_custom_call.1} parent=1 // pred_check_branch
      %31 = sbr.rel (0) target = $region13
    $region12: #{tpu_custom_call.1} parent=1 // pred_region
      %s33 = ssub.s32 16, 16
      %34 = vsyncadd [#allocation6], %s33
      %s36 = sshll.u32 [#allocation5], 4
      %s37 = int_to_ptr.vmem [resolvable:$true] %s36
      %39 = dma.hbm_to_vmem [thread:$0]  %s2, 16, %s37, [#allocation6]
    $region13: #{tpu_custom_call.1} parent=1 // pred_fallthru
      _
    // Predicated region
    $region14: #{tpu_custom_call.1} parent=1 // pred_check
      _
    $region15: #{tpu_custom_call.1} parent=1 // pred_check_branch
      %41 = sbr.rel (0) target = $region17
    $region16: #{tpu_custom_call.1} parent=1 // pred_region
      _
    $region17: #{tpu_custom_call.1} parent=1 // pred_fallthru
      _
    // Predicated region
    $region18: #{tpu_custom_call.1} parent=1 // pred_check
      _
    $region19: #{tpu_custom_call.1} parent=1 // pred_check_branch
      %43 = sbr.rel (0) target = $region21
    $region20: #{tpu_custom_call.1} parent=1 // pred_region
      _
    $region21: #{tpu_custom_call.1} parent=1 // pred_fallthru
      _
    // Predicated region
    $region22: #{tpu_custom_call.1} parent=1 // pred_check
      _
    $region23: #{tpu_custom_call.1} parent=1 // pred_check_branch
      %45 = sbr.rel (0) target = $region25
    $region24: #{tpu_custom_call.1} parent=1 // pred_region
      %s47 = ssub.s32 2048, 2048
      %48 = vsyncadd [#allocation6], %s47
      %s49 = sshll.u32 [#allocation7], 4
      %s50 = int_to_ptr.vmem [resolvable:$true] %s49
      %55 = dma.hbm_to_vmem [thread:$0]  %s5, 2048, %s50, [#allocation6], 128, 128, 8
    $region25: #{tpu_custom_call.1} parent=1 // pred_fallthru
      _
    // Predicated region
    $region26: #{tpu_custom_call.1} parent=1 // pred_check
      _
    $region27: #{tpu_custom_call.1} parent=1 // pred_check_branch
      %57 = sbr.rel (0) target = $region29
    $region28: #{tpu_custom_call.1} parent=1 // pred_region
      _
    $region29: #{tpu_custom_call.1} parent=1 // pred_fallthru
      _
    // Predicated region
    $region30: #{tpu_custom_call.1} parent=1 // pred_check
      _
    $region31: #{tpu_custom_call.1} parent=1 // pred_check_branch
      %59 = sbr.rel (0) target = $region33
    $region32: #{tpu_custom_call.1} parent=1 // pred_region
      _
    $region33: #{tpu_custom_call.1} parent=1 // pred_fallthru
      _
    // Predicated region
    $region34: #{tpu_custom_call.1} parent=1 // pred_check
      _
    $region35: #{tpu_custom_call.1} parent=1 // pred_check_branch
      %61 = sbr.rel (0) target = $region37
    $region36: #{tpu_custom_call.1} parent=1 // pred_region
      _
    $region37: #{tpu_custom_call.1} parent=1 // pred_fallthru
      _
    // Predicated region
    $region38: #{tpu_custom_call.1} parent=1 // pred_check
      _
    $region39: #{tpu_custom_call.1} parent=1 // pred_check_branch
      %63 = sbr.rel (0) target = $region41
    $region40: #{tpu_custom_call.1} parent=1 // pred_region
      %64 = dma.done [#allocation4], 128
    $region41: #{tpu_custom_call.1} parent=1 // pred_fallthru
      _
    // Predicated region
    $region42: #{tpu_custom_call.1} parent=1 // pred_check
      _
    $region43: #{tpu_custom_call.1} parent=1 // pred_check_branch
      %66 = sbr.rel (0) target = $region45
    $region44: #{tpu_custom_call.1} parent=1 // pred_region
      %67 = dma.done [#allocation6], 16
    $region45: #{tpu_custom_call.1} parent=1 // pred_fallthru
      _
    // Predicated region
    $region46: #{tpu_custom_call.1} parent=1 // pred_check
      _
    $region47: #{tpu_custom_call.1} parent=1 // pred_check_branch
      %69 = sbr.rel (0) target = $region49
    $region48: #{tpu_custom_call.1} parent=1 // pred_region
      %70 = dma.done [#allocation6], 2048
    $region49: #{tpu_custom_call.1} parent=1 // pred_fallthru
      _
    %v71 = vld [vmem:[#allocation3] sm:$0xff]
    %v72 = vld [vmem:[%s1] sm:$0xff]
    %v73 = vld [vmem:[%s1 + $0x8] sm:$0xff]
    %v74 = vld [vmem:[#allocation5] sm:$0x1]
    %v76 = vlaneseq
    %v77 = vshrl.u32 %v76, 7
    %v78 = vsub.s32 0, %v77
    %v79 = vrot.slane %v74, %v78
    %vm81 = vcmask 130048
    %v83 = vsel %vm81, %v71, 0
    %85 = vmatprep.subr.mxu0 0.0
    %86 = vmatpush1.msra.mxu0 %v72
    %87 = vmatprep.subr.mxu0 0.0
    %88 = vmatpush1.msra.mxu0 %v73
    %89 = vmatprep.subr.mxu0 0.0
    %90 = vmatpush1.msra.mxu0 0.0
    %91 = vmatprep.subr.mxu0 0.0
    %92 = vmatpush1.msra.mxu0 0.0
    %93 = vmatprep.subr.mxu0 0.0
    %94 = vmatpush1.msra.mxu0 0.0
    %95 = vmatprep.subr.mxu0 0.0
    %96 = vmatpush1.msra.mxu0 0.0
    %97 = vmatprep.subr.mxu0 0.0
    %98 = vmatpush1.msra.mxu0 0.0
    %99 = vmatprep.subr.mxu0 0.0
    %100 = vmatpush1.msra.mxu0 0.0
    %101 = vmatprep.subr.mxu0 0.0
    %102 = vmatpush1.msra.mxu0 0.0
    %103 = vmatprep.subr.mxu0 0.0
    %104 = vmatpush1.msra.mxu0 0.0
    %105 = vmatprep.subr.mxu0 0.0
    %106 = vmatpush1.msra.mxu0 0.0
    %107 = vmatprep.subr.mxu0 0.0
    %108 = vmatpush1.msra.mxu0 0.0
    %109 = vmatprep.subr.mxu0 0.0
    %110 = vmatpush1.msra.mxu0 0.0
    %111 = vmatprep.subr.mxu0 0.0
    %112 = vmatpush1.msra.mxu0 0.0
    %113 = vmatprep.subr.mxu0 0.0
    %114 = vmatpush1.msra.mxu0 0.0
    %115 = vmatprep.subr.mxu0 0.0
    %116 = vmatpush1.msra.mxu0 0.0
    %117 = vmatprep.subr.mxu0 0.0
    %118 = vmatpush1.msra.mxu0 0.0
    %119 = vmatprep.subr.mxu0 0.0
    %120 = vmatpush1.msra.mxu0 0.0
    %121 = vmatprep.subr.mxu0 0.0
    %122 = vmatpush1.msra.mxu0 0.0
    %123 = vmatprep.subr.mxu0 0.0
    %124 = vmatpush1.msra.mxu0 0.0
    %125 = vmatprep.subr.mxu0 0.0
    %126 = vmatpush1.msra.mxu0 0.0
    %127 = vmatprep.subr.mxu0 0.0
    %128 = vmatpush1.msra.mxu0 0.0
    %129 = vmatprep.subr.mxu0 0.0
    %130 = vmatpush1.msra.mxu0 0.0
    %131 = vmatprep.subr.mxu0 0.0
    %132 = vmatpush1.msra.mxu0 0.0
    %133 = vmatprep.subr.mxu0 0.0
    %134 = vmatpush1.msra.mxu0 0.0
    %135 = vmatprep.subr.mxu0 0.0
    %136 = vmatpush1.msra.mxu0 0.0
    %137 = vmatprep.subr.mxu0 0.0
    %138 = vmatpush1.msra.mxu0 0.0
    %139 = vmatprep.subr.mxu0 0.0
    %140 = vmatpush1.msra.mxu0 0.0
    %141 = vmatprep.subr.mxu0 0.0
    %142 = vmatpush1.msra.mxu0 0.0
    %143 = vmatprep.subr.mxu0 0.0
    %144 = vmatpush1.msra.mxu0 0.0
    %145 = vmatprep.subr.mxu0 0.0
    %146 = vmatpush1.msra.mxu0 0.0
    %147 = vmatprep.subr.mxu0 0.0
    %148 = vmatpush1.msra.mxu0 0.0
    %149 = vmatprep.mubr.f32.mxu0 0.0
    %150 = vmatmul.mubr.f32.gmra.mrb[0].mxu0 %v83
    %v151 = vpop.f32.mrb[0].mxu0
    %v152 = vadd.f32 %v79, %v151
    %v153 = vpop.f32.mrb[0].mxu0
    %154 = vdwg.mxu0
    %v155 = vmax.f32 %v152, 0.0
    %v156 = vld [vmem:[%s3] sm:$0xff]
    %v157 = vld [vmem:[%s3 + $0x8] sm:$0xff]
    %v158 = vld [vmem:[%s3 + $0x10] sm:$0xff]
    %v159 = vld [vmem:[%s3 + $0x18] sm:$0xff]
    %v160 = vld [vmem:[%s3 + $0x20] sm:$0xff]
    %v161 = vld [vmem:[%s3 + $0x28] sm:$0xff]
    %v162 = vld [vmem:[%s3 + $0x30] sm:$0xff]
    %v163 = vld [vmem:[%s3 + $0x38] sm:$0xff]
    %v164 = vld [vmem:[%s3 + $0x40] sm:$0xff]
    %v165 = vld [vmem:[%s3 + $0x48] sm:$0xff]
    %v166 = vld [vmem:[%s3 + $0x50] sm:$0xff]
    %v167 = vld [vmem:[%s3 + $0x58] sm:$0xff]
    %v168 = vld [vmem:[%s3 + $0x60] sm:$0xff]
    %v169 = vld [vmem:[%s3 + $0x68] sm:$0xff]
    %v170 = vld [vmem:[%s3 + $0x70] sm:$0xff]
    %v171 = vld [vmem:[%s3 + $0x78] sm:$0xff]
    %v172 = vld [vmem:[%s4] sm:$0x1]
    %v174 = vlaneseq
    %v175 = vshrl.u32 %v174, 7
    %v176 = vsub.s32 0, %v175
    %v177 = vrot.slane %v172, %v176
    %179 = vmatprep.subr.mxu0 0.0
    %180 = vmatpush1.msra.mxu0 %v156
    %181 = vmatprep.subr.mxu0 0.0
    %182 = vmatpush1.msra.mxu0 %v157
    %183 = vmatprep.subr.mxu0 0.0
    %184 = vmatpush1.msra.mxu0 %v158
    %185 = vmatprep.subr.mxu0 0.0
    %186 = vmatpush1.msra.mxu0 %v159
    %187 = vmatprep.subr.mxu0 0.0
    %188 = vmatpush1.msra.mxu0 %v160
    %189 = vmatprep.subr.mxu0 0.0
    %190 = vmatpush1.msra.mxu0 %v161
    %191 = vmatprep.subr.mxu0 0.0
    %192 = vmatpush1.msra.mxu0 %v162
    %193 = vmatprep.subr.mxu0 0.0
    %194 = vmatpush1.msra.mxu0 %v163
    %195 = vmatprep.subr.mxu0 0.0
    %196 = vmatpush1.msra.mxu0 %v164
    %197 = vmatprep.subr.mxu0 0.0
    %198 = vmatpush1.msra.mxu0 %v165
    %199 = vmatprep.subr.mxu0 0.0
    %200 = vmatpush1.msra.mxu0 %v166
    %201 = vmatprep.subr.mxu0 0.0
    %202 = vmatpush1.msra.mxu0 %v167
    %203 = vmatprep.subr.mxu0 0.0
    %204 = vmatpush1.msra.mxu0 %v168
    %205 = vmatprep.subr.mxu0 0.0
    %206 = vmatpush1.msra.mxu0 %v169
    %207 = vmatprep.subr.mxu0 0.0
    %208 = vmatpush1.msra.mxu0 %v170
    %209 = vmatprep.subr.mxu0 0.0
    %210 = vmatpush1.msra.mxu0 %v171
    %211 = vmatprep.subr.mxu0 0.0
    %212 = vmatpush1.msra.mxu0 0.0
    %213 = vmatprep.subr.mxu0 0.0
    %214 = vmatpush1.msra.mxu0 0.0
    %215 = vmatprep.subr.mxu0 0.0
    %216 = vmatpush1.msra.mxu0 0.0
    %217 = vmatprep.subr.mxu0 0.0
    %218 = vmatpush1.msra.mxu0 0.0
    %219 = vmatprep.subr.mxu0 0.0
    %220 = vmatpush1.msra.mxu0 0.0
    %221 = vmatprep.subr.mxu0 0.0
    %222 = vmatpush1.msra.mxu0 0.0
    %223 = vmatprep.subr.mxu0 0.0
    %224 = vmatpush1.msra.mxu0 0.0
    %225 = vmatprep.subr.mxu0 0.0
    %226 = vmatpush1.msra.mxu0 0.0
    %227 = vmatprep.subr.mxu0 0.0
    %228 = vmatpush1.msra.mxu0 0.0
    %229 = vmatprep.subr.mxu0 0.0
    %230 = vmatpush1.msra.mxu0 0.0
    %231 = vmatprep.subr.mxu0 0.0
    %232 = vmatpush1.msra.mxu0 0.0
    %233 = vmatprep.subr.mxu0 0.0
    %234 = vmatpush1.msra.mxu0 0.0
    %235 = vmatprep.subr.mxu0 0.0
    %236 = vmatpush1.msra.mxu0 0.0
    %237 = vmatprep.subr.mxu0 0.0
    %238 = vmatpush1.msra.mxu0 0.0
    %239 = vmatprep.subr.mxu0 0.0
    %240 = vmatpush1.msra.mxu0 0.0
    %241 = vmatprep.subr.mxu0 0.0
    %242 = vmatpush1.msra.mxu0 0.0
    %243 = vmatprep.mubr.f32.mxu0 0.0
    %244 = vmatmul.mubr.f32.gmra.mrb[0].mxu0 %v155
    %v245 = vpop.f32.mrb[0].mxu0
    %v246 = vadd.f32 %v177, %v245
    %v247 = vpop.f32.mrb[0].mxu0
    %248 = vdwg.mxu0
    %v249 = vmax.f32 %v246, 0.0
    %v250 = vld [vmem:[#allocation7] sm:$0xff]
    %v251 = vld [vmem:[#allocation7 + $0x8] sm:$0xff]
    %v252 = vld [vmem:[#allocation7 + $0x10] sm:$0xff]
    %v253 = vld [vmem:[#allocation7 + $0x18] sm:$0xff]
    %v254 = vld [vmem:[#allocation7 + $0x20] sm:$0xff]
    %v255 = vld [vmem:[#allocation7 + $0x28] sm:$0xff]
    %v256 = vld [vmem:[#allocation7 + $0x30] sm:$0xff]
    %v257 = vld [vmem:[#allocation7 + $0x38] sm:$0xff]
    %v258 = vld [vmem:[#allocation7 + $0x40] sm:$0xff]
    %v259 = vld [vmem:[#allocation7 + $0x48] sm:$0xff]
    %v260 = vld [vmem:[#allocation7 + $0x50] sm:$0xff]
    %v261 = vld [vmem:[#allocation7 + $0x58] sm:$0xff]
    %v262 = vld [vmem:[#allocation7 + $0x60] sm:$0xff]
    %v263 = vld [vmem:[#allocation7 + $0x68] sm:$0xff]
    %v264 = vld [vmem:[#allocation7 + $0x70] sm:$0xff]
    %v265 = vld [vmem:[#allocation7 + $0x78] sm:$0xff]
    %v266 = vld [vmem:[%s6] sm:$0x1]
    %v268 = vlaneseq
    %v269 = vshrl.u32 %v268, 7
    %v270 = vsub.s32 0, %v269
    %v271 = vrot.slane %v266, %v270
    %273 = vmatprep.subr.mxu0 0.0
    %274 = vmatpush1.msra.mxu0 %v250
    %275 = vmatprep.subr.mxu0 0.0
    %276 = vmatpush1.msra.mxu0 %v251
    %277 = vmatprep.subr.mxu0 0.0
    %278 = vmatpush1.msra.mxu0 %v252
    %279 = vmatprep.subr.mxu0 0.0
    %280 = vmatpush1.msra.mxu0 %v253
    %281 = vmatprep.subr.mxu0 0.0
    %282 = vmatpush1.msra.mxu0 %v254
    %283 = vmatprep.subr.mxu0 0.0
    %284 = vmatpush1.msra.mxu0 %v255
    %285 = vmatprep.subr.mxu0 0.0
    %286 = vmatpush1.msra.mxu0 %v256
    %287 = vmatprep.subr.mxu0 0.0
    %288 = vmatpush1.msra.mxu0 %v257
    %289 = vmatprep.subr.mxu0 0.0
    %290 = vmatpush1.msra.mxu0 %v258
    %291 = vmatprep.subr.mxu0 0.0
    %292 = vmatpush1.msra.mxu0 %v259
    %293 = vmatprep.subr.mxu0 0.0
    %294 = vmatpush1.msra.mxu0 %v260
    %295 = vmatprep.subr.mxu0 0.0
    %296 = vmatpush1.msra.mxu0 %v261
    %297 = vmatprep.subr.mxu0 0.0
    %298 = vmatpush1.msra.mxu0 %v262
    %299 = vmatprep.subr.mxu0 0.0
    %300 = vmatpush1.msra.mxu0 %v263
    %301 = vmatprep.subr.mxu0 0.0
    %302 = vmatpush1.msra.mxu0 %v264
    %303 = vmatprep.subr.mxu0 0.0
    %304 = vmatpush1.msra.mxu0 %v265
    %305 = vmatprep.subr.mxu0 0.0
    %306 = vmatpush1.msra.mxu0 0.0
    %307 = vmatprep.subr.mxu0 0.0
    %308 = vmatpush1.msra.mxu0 0.0
    %309 = vmatprep.subr.mxu0 0.0
    %310 = vmatpush1.msra.mxu0 0.0
    %311 = vmatprep.subr.mxu0 0.0
    %312 = vmatpush1.msra.mxu0 0.0
    %313 = vmatprep.subr.mxu0 0.0
    %314 = vmatpush1.msra.mxu0 0.0
    %315 = vmatprep.subr.mxu0 0.0
    %316 = vmatpush1.msra.mxu0 0.0
    %317 = vmatprep.subr.mxu0 0.0
    %318 = vmatpush1.msra.mxu0 0.0
    %319 = vmatprep.subr.mxu0 0.0
    %320 = vmatpush1.msra.mxu0 0.0
    %321 = vmatprep.subr.mxu0 0.0
    %322 = vmatpush1.msra.mxu0 0.0
    %323 = vmatprep.subr.mxu0 0.0
    %324 = vmatpush1.msra.mxu0 0.0
    %325 = vmatprep.subr.mxu0 0.0
    %326 = vmatpush1.msra.mxu0 0.0
    %327 = vmatprep.subr.mxu0 0.0
    %328 = vmatpush1.msra.mxu0 0.0
    %329 = vmatprep.subr.mxu0 0.0
    %330 = vmatpush1.msra.mxu0 0.0
    %331 = vmatprep.subr.mxu0 0.0
    %332 = vmatpush1.msra.mxu0 0.0
    %333 = vmatprep.subr.mxu0 0.0
    %334 = vmatpush1.msra.mxu0 0.0
    %335 = vmatprep.subr.mxu0 0.0
    %336 = vmatpush1.msra.mxu0 0.0
    %337 = vmatprep.mubr.f32.mxu0 0.0
    %338 = vmatmul.mubr.f32.gmra.mrb[0].mxu0 %v249
    %v339 = vpop.f32.mrb[0].mxu0
    %v340 = vadd.f32 %v271, %v339
    %v341 = vpop.f32.mrb[0].mxu0
    %342 = vdwg.mxu0
    %v343 = vmax.f32 %v340, 0.0
    %v344 = vld [vmem:[%s7] sm:$0xff]
    %v345 = vld [vmem:[%s7 + $0x8] sm:$0xff]
    %v346 = vld [vmem:[%s7 + $0x10] sm:$0xff]
    %v347 = vld [vmem:[%s7 + $0x18] sm:$0xff]
    %v348 = vld [vmem:[%s7 + $0x20] sm:$0xff]
    %v349 = vld [vmem:[%s7 + $0x28] sm:$0xff]
    %v350 = vld [vmem:[%s7 + $0x30] sm:$0xff]
    %v351 = vld [vmem:[%s7 + $0x38] sm:$0xff]
    %v352 = vld [vmem:[%s7 + $0x40] sm:$0xff]
    %v353 = vld [vmem:[%s7 + $0x48] sm:$0xff]
    %v354 = vld [vmem:[%s7 + $0x50] sm:$0xff]
    %v355 = vld [vmem:[%s7 + $0x58] sm:$0xff]
    %v356 = vld [vmem:[%s7 + $0x60] sm:$0xff]
    %v357 = vld [vmem:[%s7 + $0x68] sm:$0xff]
    %v358 = vld [vmem:[%s7 + $0x70] sm:$0xff]
    %v359 = vld [vmem:[%s7 + $0x78] sm:$0xff]
    %v360 = vld [vmem:[#allocation2] sm:$0x1]
    %v362 = vlaneseq
    %v363 = vshrl.u32 %v362, 7
    %v364 = vsub.s32 0, %v363
    %v365 = vrot.slane %v360, %v364
    %367 = vmatprep.subr.mxu0 0.0
    %368 = vmatpush1.msra.mxu0 %v344
    %369 = vmatprep.subr.mxu0 0.0
    %370 = vmatpush1.msra.mxu0 %v345
    %371 = vmatprep.subr.mxu0 0.0
    %372 = vmatpush1.msra.mxu0 %v346
    %373 = vmatprep.subr.mxu0 0.0
    %374 = vmatpush1.msra.mxu0 %v347
    %375 = vmatprep.subr.mxu0 0.0
    %376 = vmatpush1.msra.mxu0 %v348
    %377 = vmatprep.subr.mxu0 0.0
    %378 = vmatpush1.msra.mxu0 %v349
    %379 = vmatprep.subr.mxu0 0.0
    %380 = vmatpush1.msra.mxu0 %v350
    %381 = vmatprep.subr.mxu0 0.0
    %382 = vmatpush1.msra.mxu0 %v351
    %383 = vmatprep.subr.mxu0 0.0
    %384 = vmatpush1.msra.mxu0 %v352
    %385 = vmatprep.subr.mxu0 0.0
    %386 = vmatpush1.msra.mxu0 %v353
    %387 = vmatprep.subr.mxu0 0.0
    %388 = vmatpush1.msra.mxu0 %v354
    %389 = vmatprep.subr.mxu0 0.0
    %390 = vmatpush1.msra.mxu0 %v355
    %391 = vmatprep.subr.mxu0 0.0
    %392 = vmatpush1.msra.mxu0 %v356
    %393 = vmatprep.subr.mxu0 0.0
    %394 = vmatpush1.msra.mxu0 %v357
    %395 = vmatprep.subr.mxu0 0.0
    %396 = vmatpush1.msra.mxu0 %v358
    %397 = vmatprep.subr.mxu0 0.0
    %398 = vmatpush1.msra.mxu0 %v359
    %399 = vmatprep.subr.mxu0 0.0
    %400 = vmatpush1.msra.mxu0 0.0
    %401 = vmatprep.subr.mxu0 0.0
    %402 = vmatpush1.msra.mxu0 0.0
    %403 = vmatprep.subr.mxu0 0.0
    %404 = vmatpush1.msra.mxu0 0.0
    %405 = vmatprep.subr.mxu0 0.0
    %406 = vmatpush1.msra.mxu0 0.0
    %407 = vmatprep.subr.mxu0 0.0
    %408 = vmatpush1.msra.mxu0 0.0
    %409 = vmatprep.subr.mxu0 0.0
    %410 = vmatpush1.msra.mxu0 0.0
    %411 = vmatprep.subr.mxu0 0.0
    %412 = vmatpush1.msra.mxu0 0.0
    %413 = vmatprep.subr.mxu0 0.0
    %414 = vmatpush1.msra.mxu0 0.0
    %415 = vmatprep.subr.mxu0 0.0
    %416 = vmatpush1.msra.mxu0 0.0
    %417 = vmatprep.subr.mxu0 0.0
    %418 = vmatpush1.msra.mxu0 0.0
    %419 = vmatprep.subr.mxu0 0.0
    %420 = vmatpush1.msra.mxu0 0.0
    %421 = vmatprep.subr.mxu0 0.0
    %422 = vmatpush1.msra.mxu0 0.0
    %423 = vmatprep.subr.mxu0 0.0
    %424 = vmatpush1.msra.mxu0 0.0
    %425 = vmatprep.subr.mxu0 0.0
    %426 = vmatpush1.msra.mxu0 0.0
    %427 = vmatprep.subr.mxu0 0.0
    %428 = vmatpush1.msra.mxu0 0.0
    %429 = vmatprep.subr.mxu0 0.0
    %430 = vmatpush1.msra.mxu0 0.0
    %431 = vmatprep.mubr.f32.mxu0 0.0
    %432 = vmatmul.mubr.f32.gmra.mrb[0].mxu0 %v343
    %v433 = vpop.f32.mrb[0].mxu0
    %v434 = vadd.f32 %v365, %v433
    %v435 = vpop.f32.mrb[0].mxu0
    %436 = vdwg.mxu0
    %vm437 = vcmask 7168
    %438 = vst.msk [vmem:[%s9] sm:$0xff] %vm437, %v434
    // Predicated region
    $region50: #{tpu_custom_call.1} parent=1 // pred_check
      _
    $region51: #{tpu_custom_call.1} parent=1 // pred_check_branch
      %440 = sbr.rel (0) target = $region53
    $region52: #{tpu_custom_call.1} parent=1 // pred_region
      _
    $region53: #{tpu_custom_call.1} parent=1 // pred_fallthru
      _
    // Predicated region
    $region54: #{tpu_custom_call.1} parent=1 // pred_check
      _
    $region55: #{tpu_custom_call.1} parent=1 // pred_check_branch
      %442 = sbr.rel (0) target = $region57
    $region56: #{tpu_custom_call.1} parent=1 // pred_region
      _
    $region57: #{tpu_custom_call.1} parent=1 // pred_fallthru
      _
    %443 = vsyncpa [#allocation4], 1
    %444 = vsyncpa [#allocation6], 1

// kernel: tpu_custom_call.1
$region0: #{tpu_custom_call.1}
  #allocation0 [shape = 'u32[]', space=smem, size = 0x4, offset = 0x4, fixed_abs, tag = 'smem constant byte address 0x4 - core index']
  #allocation1 [shape = 'u32[144,128]{1,0:T(1,128)}', space=vmem, size = 0x12000, scoped, tag = 'internal scratch']
  #allocation2 [shape = 'f32[1,1]{1,0:T(1,128)S(1)}', space=vmem, size = 0x200, scoped, tag = 'scoped memory for tpu_custom_call.1']
  %s0 = inlined_call_operand.hbm [shape: f32[8,16], index: 0, kind: input, shape index: {}]
  %s1 = inlined_call_operand.vmem [shape: f32[16,128], index: 1, kind: input, shape index: {}]
  %s2 = inlined_call_operand.hbm [shape: f32[1,128], index: 2, kind: input, shape index: {}]
  %s3 = inlined_call_operand.vmem [shape: f32[128,128], index: 3, kind: input, shape index: {}]
  %s4 = inlined_call_operand.vmem [shape: f32[1,128], index: 4, kind: input, shape index: {}]
  %s5 = inlined_call_operand.hbm [shape: f32[128,128], index: 5, kind: input, shape index: {}]
  %s6 = inlined_call_operand.vmem [shape: f32[1,128], index: 6, kind: input, shape index: {}]
  %s7 = inlined_call_operand.vmem [shape: f32[128,1], index: 7, kind: input, shape index: {}]
  %s8 = inlined_call_operand.<no memory space> [shape: f32[1,1], index: 8, kind: input, shape index: {}]
  %s9 = inlined_call_operand.vmem [shape: f32[8,1], index: 9, kind: output, shape index: {}]
  %s10 = sld [smem:[#allocation0]]
  $region58: #{tpu_custom_call.1} parent=0
    _
  %s12 = ssub.s32 1, %s10
  %s13 = scalar_select 0, %s12, %s10
  %v14 = vstv %s8
  %15 = vst [vmem:[#allocation2] sm:$0x1] %v14
  $region1: #{tpu_custom_call.1} parent=0
    #allocation3 [shape = 'u8[4096]{0}', space=vmem, size = 0x1000, scoped, tag = 'input window, operand 0, single buffered']
    #allocation4 [shape = 's32[1]{0}', space=sflag, size = 0x4, scoped, tag = 'scoped memory for tpu_custom_call.1']
    #allocation5 [shape = 'u8[512]{0}', space=vmem, size = 0x400, scoped, tag = 'input window, operand 2, single buffered']
    #allocation6 [shape = 's32[1]{0}', space=sflag, size = 0x4, scoped, tag = 'scoped memory for tpu_custom_call.1']
    #allocation7 [shape = 'u8[65536]{0}', space=vmem, size = 0x10000, scoped, tag = 'input window, operand 5, single buffered']
    %16 = vsyncpa [#allocation4], 0
    %17 = vsyncpa [#allocation6], 0
    // Predicated region
    $region2: #{tpu_custom_call.1} parent=1 // pred_check
      _
    $region3: #{tpu_custom_call.1} parent=1 // pred_check_branch
      %19 = sbr.rel (0) target = $region5
    $region4: #{tpu_custom_call.1} parent=1 // pred_region
      %s21 = ssub.s32 128, 128
      %22 = vsyncadd [#allocation4], %s21
      %s24 = sshll.u32 [#allocation3], 4
      %s25 = int_to_ptr.vmem [resolvable:$true] %s24
      %27 = dma.hbm_to_vmem [thread:$0]  %s0, 128, %s25, [#allocation4]
    $region5: #{tpu_custom_call.1} parent=1 // pred_fallthru
      _
    // Predicated region
    $region6: #{tpu_custom_call.1} parent=1 // pred_check
      _
    $region7: #{tpu_custom_call.1} parent=1 // pred_check_branch
      %29 = sbr.rel (0) target = $region9
    $region8: #{tpu_custom_call.1} parent=1 // pred_region
      _
    $region9: #{tpu_custom_call.1} parent=1 // pred_fallthru
      _
    // Predicated region
    $region10: #{tpu_custom_call.1} parent=1 // pred_check
      _
    $region11: #{tpu_custom_call.1} parent=1 // pred_check_branch
      %31 = sbr.rel (0) target = $region13
    $region12: #{tpu_custom_call.1} parent=1 // pred_region
      %s33 = ssub.s32 16, 16
      %34 = vsyncadd [#allocation6], %s33
      %s36 = sshll.u32 [#allocation5], 4
      %s37 = int_to_ptr.vmem [resolvable:$true] %s36
      %39 = dma.hbm_to_vmem [thread:$0]  %s2, 16, %s37, [#allocation6]
    $region13: #{tpu_custom_call.1} parent=1 // pred_fallthru
      _
    // Predicated region
    $region14: #{tpu_custom_call.1} parent=1 // pred_check
      _
    $region15: #{tpu_custom_call.1} parent=1 // pred_check_branch
      %41 = sbr.rel (0) target = $region17
    $region16: #{tpu_custom_call.1} parent=1 // pred_region
      _
    $region17: #{tpu_custom_call.1} parent=1 // pred_fallthru
      _
    // Predicated region
    $region18: #{tpu_custom_call.1} parent=1 // pred_check
      _
    $region19: #{tpu_custom_call.1} parent=1 // pred_check_branch
      %43 = sbr.rel (0) target = $region21
    $region20: #{tpu_custom_call.1} parent=1 // pred_region
      _
    $region21: #{tpu_custom_call.1} parent=1 // pred_fallthru
      _
    // Predicated region
    $region22: #{tpu_custom_call.1} parent=1 // pred_check
      _
    $region23: #{tpu_custom_call.1} parent=1 // pred_check_branch
      %45 = sbr.rel (0) target = $region25
    $region24: #{tpu_custom_call.1} parent=1 // pred_region
      %s47 = ssub.s32 2048, 2048
      %48 = vsyncadd [#allocation6], %s47
      %s49 = sshll.u32 [#allocation7], 4
      %s50 = int_to_ptr.vmem [resolvable:$true] %s49
      %55 = dma.hbm_to_vmem [thread:$0]  %s5, 2048, %s50, [#allocation6], 128, 128, 8
    $region25: #{tpu_custom_call.1} parent=1 // pred_fallthru
      _
    // Predicated region
    $region26: #{tpu_custom_call.1} parent=1 // pred_check
      _
    $region27: #{tpu_custom_call.1} parent=1 // pred_check_branch
      %57 = sbr.rel (0) target = $region29
    $region28: #{tpu_custom_call.1} parent=1 // pred_region
      _
    $region29: #{tpu_custom_call.1} parent=1 // pred_fallthru
      _
    // Predicated region
    $region30: #{tpu_custom_call.1} parent=1 // pred_check
      _
    $region31: #{tpu_custom_call.1} parent=1 // pred_check_branch
      %59 = sbr.rel (0) target = $region33
    $region32: #{tpu_custom_call.1} parent=1 // pred_region
      _
    $region33: #{tpu_custom_call.1} parent=1 // pred_fallthru
      _
    // Predicated region
    $region34: #{tpu_custom_call.1} parent=1 // pred_check
      _
    $region35: #{tpu_custom_call.1} parent=1 // pred_check_branch
      %61 = sbr.rel (0) target = $region37
    $region36: #{tpu_custom_call.1} parent=1 // pred_region
      _
    $region37: #{tpu_custom_call.1} parent=1 // pred_fallthru
      _
    // Predicated region
    $region38: #{tpu_custom_call.1} parent=1 // pred_check
      _
    $region39: #{tpu_custom_call.1} parent=1 // pred_check_branch
      %63 = sbr.rel (0) target = $region41
    $region40: #{tpu_custom_call.1} parent=1 // pred_region
      %64 = dma.done [#allocation4], 128
    $region41: #{tpu_custom_call.1} parent=1 // pred_fallthru
      _
    // Predicated region
    $region42: #{tpu_custom_call.1} parent=1 // pred_check
      _
    $region43: #{tpu_custom_call.1} parent=1 // pred_check_branch
      %66 = sbr.rel (0) target = $region45
    $region44: #{tpu_custom_call.1} parent=1 // pred_region
      %67 = dma.done [#allocation6], 16
    $region45: #{tpu_custom_call.1} parent=1 // pred_fallthru
      _
    // Predicated region
    $region46: #{tpu_custom_call.1} parent=1 // pred_check
      _
    $region47: #{tpu_custom_call.1} parent=1 // pred_check_branch
      %69 = sbr.rel (0) target = $region49
    $region48: #{tpu_custom_call.1} parent=1 // pred_region
      %70 = dma.done [#allocation6], 2048
    $region49: #{tpu_custom_call.1} parent=1 // pred_fallthru
      _
    %v71 = vld [vmem:[#allocation3] sm:$0xff]
    %v72 = vld [vmem:[%s1] sm:$0xff]
    %v73 = vld [vmem:[%s1 + $0x8] sm:$0xff]
    %v74 = vld [vmem:[#allocation5] sm:$0x1]
    %v76 = vlaneseq
    %v77 = vshrl.u32 %v76, 7
    %v78 = vsub.s32 0, %v77
    %v79 = vrot.slane %v74, %v78
    %vm81 = vcmask 130048
    %v83 = vsel %vm81, %v71, 0
    %85 = vmatprep.subr.mxu0 0.0
    %86 = vmatpush1.msra.mxu0 %v72
    %87 = vmatprep.subr.mxu0 0.0
    %88 = vmatpush1.msra.mxu0 %v73
    %89 = vmatprep.subr.mxu0 0.0
    %90 = vmatpush1.msra.mxu0 0.0
    %91 = vmatprep.subr.mxu0 0.0
    %92 = vmatpush1.msra.mxu0 0.0
    %93 = vmatprep.subr.mxu0 0.0
    %94 = vmatpush1.msra.mxu0 0.0
    %95 = vmatprep.subr.mxu0 0.0
    %96 = vmatpush1.msra.mxu0 0.0
    %97 = vmatprep.subr.mxu0 0.0
    %98 = vmatpush1.msra.mxu0 0.0
    %99 = vmatprep.subr.mxu0 0.0
    %100 = vmatpush1.msra.mxu0 0.0
    %101 = vmatprep.subr.mxu0 0.0
    %102 = vmatpush1.msra.mxu0 0.0
    %103 = vmatprep.subr.mxu0 0.0
    %104 = vmatpush1.msra.mxu0 0.0
    %105 = vmatprep.subr.mxu0 0.0
    %106 = vmatpush1.msra.mxu0 0.0
    %107 = vmatprep.subr.mxu0 0.0
    %108 = vmatpush1.msra.mxu0 0.0
    %109 = vmatprep.subr.mxu0 0.0
    %110 = vmatpush1.msra.mxu0 0.0
    %111 = vmatprep.subr.mxu0 0.0
    %112 = vmatpush1.msra.mxu0 0.0
    %113 = vmatprep.subr.mxu0 0.0
    %114 = vmatpush1.msra.mxu0 0.0
    %115 = vmatprep.subr.mxu0 0.0
    %116 = vmatpush1.msra.mxu0 0.0
    %117 = vmatprep.subr.mxu0 0.0
    %118 = vmatpush1.msra.mxu0 0.0
    %119 = vmatprep.subr.mxu0 0.0
    %120 = vmatpush1.msra.mxu0 0.0
    %121 = vmatprep.subr.mxu0 0.0
    %122 = vmatpush1.msra.mxu0 0.0
    %123 = vmatprep.subr.mxu0 0.0
    %124 = vmatpush1.msra.mxu0 0.0
    %125 = vmatprep.subr.mxu0 0.0
    %126 = vmatpush1.msra.mxu0 0.0
    %127 = vmatprep.subr.mxu0 0.0
    %128 = vmatpush1.msra.mxu0 0.0
    %129 = vmatprep.subr.mxu0 0.0
    %130 = vmatpush1.msra.mxu0 0.0
    %131 = vmatprep.subr.mxu0 0.0
    %132 = vmatpush1.msra.mxu0 0.0
    %133 = vmatprep.subr.mxu0 0.0
    %134 = vmatpush1.msra.mxu0 0.0
    %135 = vmatprep.subr.mxu0 0.0
    %136 = vmatpush1.msra.mxu0 0.0
    %137 = vmatprep.subr.mxu0 0.0
    %138 = vmatpush1.msra.mxu0 0.0
    %139 = vmatprep.subr.mxu0 0.0
    %140 = vmatpush1.msra.mxu0 0.0
    %141 = vmatprep.subr.mxu0 0.0
    %142 = vmatpush1.msra.mxu0 0.0
    %143 = vmatprep.subr.mxu0 0.0
    %144 = vmatpush1.msra.mxu0 0.0
    %145 = vmatprep.subr.mxu0 0.0
    %146 = vmatpush1.msra.mxu0 0.0
    %147 = vmatprep.subr.mxu0 0.0
    %148 = vmatpush1.msra.mxu0 0.0
    %149 = vmatprep.mubr.f32.mxu0 0.0
    %150 = vmatmul.mubr.f32.gmra.mrb[0].mxu0 %v83
    %v151 = vpop.f32.mrb[0].mxu0
    %v152 = vadd.f32 %v79, %v151
    %v153 = vpop.f32.mrb[0].mxu0
    %154 = vdwg.mxu0
    %v155 = vmax.f32 %v152, 0.0
    %v156 = vld [vmem:[%s3] sm:$0xff]
    %v157 = vld [vmem:[%s3 + $0x8] sm:$0xff]
    %v158 = vld [vmem:[%s3 + $0x10] sm:$0xff]
    %v159 = vld [vmem:[%s3 + $0x18] sm:$0xff]
    %v160 = vld [vmem:[%s3 + $0x20] sm:$0xff]
    %v161 = vld [vmem:[%s3 + $0x28] sm:$0xff]
    %v162 = vld [vmem:[%s3 + $0x30] sm:$0xff]
    %v163 = vld [vmem:[%s3 + $0x38] sm:$0xff]
    %v164 = vld [vmem:[%s3 + $0x40] sm:$0xff]
    %v165 = vld [vmem:[%s3 + $0x48] sm:$0xff]
    %v166 = vld [vmem:[%s3 + $0x50] sm:$0xff]
    %v167 = vld [vmem:[%s3 + $0x58] sm:$0xff]
    %v168 = vld [vmem:[%s3 + $0x60] sm:$0xff]
    %v169 = vld [vmem:[%s3 + $0x68] sm:$0xff]
    %v170 = vld [vmem:[%s3 + $0x70] sm:$0xff]
    %v171 = vld [vmem:[%s3 + $0x78] sm:$0xff]
    %v172 = vld [vmem:[%s4] sm:$0x1]
    %v174 = vlaneseq
    %v175 = vshrl.u32 %v174, 7
    %v176 = vsub.s32 0, %v175
    %v177 = vrot.slane %v172, %v176
    %179 = vmatprep.subr.mxu0 0.0
    %180 = vmatpush1.msra.mxu0 %v156
    %181 = vmatprep.subr.mxu0 0.0
    %182 = vmatpush1.msra.mxu0 %v157
    %183 = vmatprep.subr.mxu0 0.0
    %184 = vmatpush1.msra.mxu0 %v158
    %185 = vmatprep.subr.mxu0 0.0
    %186 = vmatpush1.msra.mxu0 %v159
    %187 = vmatprep.subr.mxu0 0.0
    %188 = vmatpush1.msra.mxu0 %v160
    %189 = vmatprep.subr.mxu0 0.0
    %190 = vmatpush1.msra.mxu0 %v161
    %191 = vmatprep.subr.mxu0 0.0
    %192 = vmatpush1.msra.mxu0 %v162
    %193 = vmatprep.subr.mxu0 0.0
    %194 = vmatpush1.msra.mxu0 %v163
    %195 = vmatprep.subr.mxu0 0.0
    %196 = vmatpush1.msra.mxu0 %v164
    %197 = vmatprep.subr.mxu0 0.0
    %198 = vmatpush1.msra.mxu0 %v165
    %199 = vmatprep.subr.mxu0 0.0
    %200 = vmatpush1.msra.mxu0 %v166
    %201 = vmatprep.subr.mxu0 0.0
    %202 = vmatpush1.msra.mxu0 %v167
    %203 = vmatprep.subr.mxu0 0.0
    %204 = vmatpush1.msra.mxu0 %v168
    %205 = vmatprep.subr.mxu0 0.0
    %206 = vmatpush1.msra.mxu0 %v169
    %207 = vmatprep.subr.mxu0 0.0
    %208 = vmatpush1.msra.mxu0 %v170
    %209 = vmatprep.subr.mxu0 0.0
    %210 = vmatpush1.msra.mxu0 %v171
    %211 = vmatprep.subr.mxu0 0.0
    %212 = vmatpush1.msra.mxu0 0.0
    %213 = vmatprep.subr.mxu0 0.0
    %214 = vmatpush1.msra.mxu0 0.0
    %215 = vmatprep.subr.mxu0 0.0
    %216 = vmatpush1.msra.mxu0 0.0
    %217 = vmatprep.subr.mxu0 0.0
    %218 = vmatpush1.msra.mxu0 0.0
    %219 = vmatprep.subr.mxu0 0.0
    %220 = vmatpush1.msra.mxu0 0.0
    %221 = vmatprep.subr.mxu0 0.0
    %222 = vmatpush1.msra.mxu0 0.0
    %223 = vmatprep.subr.mxu0 0.0
    %224 = vmatpush1.msra.mxu0 0.0
    %225 = vmatprep.subr.mxu0 0.0
    %226 = vmatpush1.msra.mxu0 0.0
    %227 = vmatprep.subr.mxu0 0.0
    %228 = vmatpush1.msra.mxu0 0.0
    %229 = vmatprep.subr.mxu0 0.0
    %230 = vmatpush1.msra.mxu0 0.0
    %231 = vmatprep.subr.mxu0 0.0
    %232 = vmatpush1.msra.mxu0 0.0
    %233 = vmatprep.subr.mxu0 0.0
    %234 = vmatpush1.msra.mxu0 0.0
    %235 = vmatprep.subr.mxu0 0.0
    %236 = vmatpush1.msra.mxu0 0.0
    %237 = vmatprep.subr.mxu0 0.0
    %238 = vmatpush1.msra.mxu0 0.0
    %239 = vmatprep.subr.mxu0 0.0
    %240 = vmatpush1.msra.mxu0 0.0
    %241 = vmatprep.subr.mxu0 0.0
    %242 = vmatpush1.msra.mxu0 0.0
    %243 = vmatprep.mubr.f32.mxu0 0.0
    %244 = vmatmul.mubr.f32.gmra.mrb[0].mxu0 %v155
    %v245 = vpop.f32.mrb[0].mxu0
    %v246 = vadd.f32 %v177, %v245
    %v247 = vpop.f32.mrb[0].mxu0
    %248 = vdwg.mxu0
    %v249 = vmax.f32 %v246, 0.0
    %v250 = vld [vmem:[#allocation7] sm:$0xff]
    %v251 = vld [vmem:[#allocation7 + $0x8] sm:$0xff]
    %v252 = vld [vmem:[#allocation7 + $0x10] sm:$0xff]
    %v253 = vld [vmem:[#allocation7 + $0x18] sm:$0xff]
    %v254 = vld [vmem:[#allocation7 + $0x20] sm:$0xff]
    %v255 = vld [vmem:[#allocation7 + $0x28] sm:$0xff]
    %v256 = vld [vmem:[#allocation7 + $0x30] sm:$0xff]
    %v257 = vld [vmem:[#allocation7 + $0x38] sm:$0xff]
    %v258 = vld [vmem:[#allocation7 + $0x40] sm:$0xff]
    %v259 = vld [vmem:[#allocation7 + $0x48] sm:$0xff]
    %v260 = vld [vmem:[#allocation7 + $0x50] sm:$0xff]
    %v261 = vld [vmem:[#allocation7 + $0x58] sm:$0xff]
    %v262 = vld [vmem:[#allocation7 + $0x60] sm:$0xff]
    %v263 = vld [vmem:[#allocation7 + $0x68] sm:$0xff]
    %v264 = vld [vmem:[#allocation7 + $0x70] sm:$0xff]
    %v265 = vld [vmem:[#allocation7 + $0x78] sm:$0xff]
    %v266 = vld [vmem:[%s6] sm:$0x1]
    %v268 = vlaneseq
    %v269 = vshrl.u32 %v268, 7
    %v270 = vsub.s32 0, %v269
    %v271 = vrot.slane %v266, %v270
    %273 = vmatprep.subr.mxu0 0.0
    %274 = vmatpush1.msra.mxu0 %v250
    %275 = vmatprep.subr.mxu0 0.0
    %276 = vmatpush1.msra.mxu0 %v251
    %277 = vmatprep.subr.mxu0 0.0
    %278 = vmatpush1.msra.mxu0 %v252
    %279 = vmatprep.subr.mxu0 0.0
    %280 = vmatpush1.msra.mxu0 %v253
    %281 = vmatprep.subr.mxu0 0.0
    %282 = vmatpush1.msra.mxu0 %v254
    %283 = vmatprep.subr.mxu0 0.0
    %284 = vmatpush1.msra.mxu0 %v255
    %285 = vmatprep.subr.mxu0 0.0
    %286 = vmatpush1.msra.mxu0 %v256
    %287 = vmatprep.subr.mxu0 0.0
    %288 = vmatpush1.msra.mxu0 %v257
    %289 = vmatprep.subr.mxu0 0.0
    %290 = vmatpush1.msra.mxu0 %v258
    %291 = vmatprep.subr.mxu0 0.0
    %292 = vmatpush1.msra.mxu0 %v259
    %293 = vmatprep.subr.mxu0 0.0
    %294 = vmatpush1.msra.mxu0 %v260
    %295 = vmatprep.subr.mxu0 0.0
    %296 = vmatpush1.msra.mxu0 %v261
    %297 = vmatprep.subr.mxu0 0.0
    %298 = vmatpush1.msra.mxu0 %v262
    %299 = vmatprep.subr.mxu0 0.0
    %300 = vmatpush1.msra.mxu0 %v263
    %301 = vmatprep.subr.mxu0 0.0
    %302 = vmatpush1.msra.mxu0 %v264
    %303 = vmatprep.subr.mxu0 0.0
    %304 = vmatpush1.msra.mxu0 %v265
    %305 = vmatprep.subr.mxu0 0.0
    %306 = vmatpush1.msra.mxu0 0.0
    %307 = vmatprep.subr.mxu0 0.0
    %308 = vmatpush1.msra.mxu0 0.0
    %309 = vmatprep.subr.mxu0 0.0
    %310 = vmatpush1.msra.mxu0 0.0
    %311 = vmatprep.subr.mxu0 0.0
    %312 = vmatpush1.msra.mxu0 0.0
    %313 = vmatprep.subr.mxu0 0.0
    %314 = vmatpush1.msra.mxu0 0.0
    %315 = vmatprep.subr.mxu0 0.0
    %316 = vmatpush1.msra.mxu0 0.0
    %317 = vmatprep.subr.mxu0 0.0
    %318 = vmatpush1.msra.mxu0 0.0
    %319 = vmatprep.subr.mxu0 0.0
    %320 = vmatpush1.msra.mxu0 0.0
    %321 = vmatprep.subr.mxu0 0.0
    %322 = vmatpush1.msra.mxu0 0.0
    %323 = vmatprep.subr.mxu0 0.0
    %324 = vmatpush1.msra.mxu0 0.0
    %325 = vmatprep.subr.mxu0 0.0
    %326 = vmatpush1.msra.mxu0 0.0
    %327 = vmatprep.subr.mxu0 0.0
    %328 = vmatpush1.msra.mxu0 0.0
    %329 = vmatprep.subr.mxu0 0.0
    %330 = vmatpush1.msra.mxu0 0.0
    %331 = vmatprep.subr.mxu0 0.0
    %332 = vmatpush1.msra.mxu0 0.0
    %333 = vmatprep.subr.mxu0 0.0
    %334 = vmatpush1.msra.mxu0 0.0
    %335 = vmatprep.subr.mxu0 0.0
    %336 = vmatpush1.msra.mxu0 0.0
    %337 = vmatprep.mubr.f32.mxu0 0.0
    %338 = vmatmul.mubr.f32.gmra.mrb[0].mxu0 %v249
    %v339 = vpop.f32.mrb[0].mxu0
    %v340 = vadd.f32 %v271, %v339
    %v341 = vpop.f32.mrb[0].mxu0
    %342 = vdwg.mxu0
    %v343 = vmax.f32 %v340, 0.0
    %v344 = vld [vmem:[%s7] sm:$0xff]
    %v345 = vld [vmem:[%s7 + $0x8] sm:$0xff]
    %v346 = vld [vmem:[%s7 + $0x10] sm:$0xff]
    %v347 = vld [vmem:[%s7 + $0x18] sm:$0xff]
    %v348 = vld [vmem:[%s7 + $0x20] sm:$0xff]
    %v349 = vld [vmem:[%s7 + $0x28] sm:$0xff]
    %v350 = vld [vmem:[%s7 + $0x30] sm:$0xff]
    %v351 = vld [vmem:[%s7 + $0x38] sm:$0xff]
    %v352 = vld [vmem:[%s7 + $0x40] sm:$0xff]
    %v353 = vld [vmem:[%s7 + $0x48] sm:$0xff]
    %v354 = vld [vmem:[%s7 + $0x50] sm:$0xff]
    %v355 = vld [vmem:[%s7 + $0x58] sm:$0xff]
    %v356 = vld [vmem:[%s7 + $0x60] sm:$0xff]
    %v357 = vld [vmem:[%s7 + $0x68] sm:$0xff]
    %v358 = vld [vmem:[%s7 + $0x70] sm:$0xff]
    %v359 = vld [vmem:[%s7 + $0x78] sm:$0xff]
    %v360 = vld [vmem:[#allocation2] sm:$0x1]
    %v362 = vlaneseq
    %v363 = vshrl.u32 %v362, 7
    %v364 = vsub.s32 0, %v363
    %v365 = vrot.slane %v360, %v364
    %367 = vmatprep.subr.mxu0 0.0
    %368 = vmatpush1.msra.mxu0 %v344
    %369 = vmatprep.subr.mxu0 0.0
    %370 = vmatpush1.msra.mxu0 %v345
    %371 = vmatprep.subr.mxu0 0.0
    %372 = vmatpush1.msra.mxu0 %v346
    %373 = vmatprep.subr.mxu0 0.0
    %374 = vmatpush1.msra.mxu0 %v347
    %375 = vmatprep.subr.mxu0 0.0
    %376 = vmatpush1.msra.mxu0 %v348
    %377 = vmatprep.subr.mxu0 0.0
    %378 = vmatpush1.msra.mxu0 %v349
    %379 = vmatprep.subr.mxu0 0.0
    %380 = vmatpush1.msra.mxu0 %v350
    %381 = vmatprep.subr.mxu0 0.0
    %382 = vmatpush1.msra.mxu0 %v351
    %383 = vmatprep.subr.mxu0 0.0
    %384 = vmatpush1.msra.mxu0 %v352
    %385 = vmatprep.subr.mxu0 0.0
    %386 = vmatpush1.msra.mxu0 %v353
    %387 = vmatprep.subr.mxu0 0.0
    %388 = vmatpush1.msra.mxu0 %v354
    %389 = vmatprep.subr.mxu0 0.0
    %390 = vmatpush1.msra.mxu0 %v355
    %391 = vmatprep.subr.mxu0 0.0
    %392 = vmatpush1.msra.mxu0 %v356
    %393 = vmatprep.subr.mxu0 0.0
    %394 = vmatpush1.msra.mxu0 %v357
    %395 = vmatprep.subr.mxu0 0.0
    %396 = vmatpush1.msra.mxu0 %v358
    %397 = vmatprep.subr.mxu0 0.0
    %398 = vmatpush1.msra.mxu0 %v359
    %399 = vmatprep.subr.mxu0 0.0
    %400 = vmatpush1.msra.mxu0 0.0
    %401 = vmatprep.subr.mxu0 0.0
    %402 = vmatpush1.msra.mxu0 0.0
    %403 = vmatprep.subr.mxu0 0.0
    %404 = vmatpush1.msra.mxu0 0.0
    %405 = vmatprep.subr.mxu0 0.0
    %406 = vmatpush1.msra.mxu0 0.0
    %407 = vmatprep.subr.mxu0 0.0
    %408 = vmatpush1.msra.mxu0 0.0
    %409 = vmatprep.subr.mxu0 0.0
    %410 = vmatpush1.msra.mxu0 0.0
    %411 = vmatprep.subr.mxu0 0.0
    %412 = vmatpush1.msra.mxu0 0.0
    %413 = vmatprep.subr.mxu0 0.0
    %414 = vmatpush1.msra.mxu0 0.0
    %415 = vmatprep.subr.mxu0 0.0
    %416 = vmatpush1.msra.mxu0 0.0
    %417 = vmatprep.subr.mxu0 0.0
    %418 = vmatpush1.msra.mxu0 0.0
    %419 = vmatprep.subr.mxu0 0.0
    %420 = vmatpush1.msra.mxu0 0.0
    %421 = vmatprep.subr.mxu0 0.0
    %422 = vmatpush1.msra.mxu0 0.0
    %423 = vmatprep.subr.mxu0 0.0
    %424 = vmatpush1.msra.mxu0 0.0
    %425 = vmatprep.subr.mxu0 0.0
    %426 = vmatpush1.msra.mxu0 0.0
    %427 = vmatprep.subr.mxu0 0.0
    %428 = vmatpush1.msra.mxu0 0.0
    %429 = vmatprep.subr.mxu0 0.0
    %430 = vmatpush1.msra.mxu0 0.0
    %431 = vmatprep.mubr.f32.mxu0 0.0
    %432 = vmatmul.mubr.f32.gmra.mrb[0].mxu0 %v343
    %v433 = vpop.f32.mrb[0].mxu0
    %v434 = vadd.f32 %v365, %v433
    %v435 = vpop.f32.mrb[0].mxu0
    %436 = vdwg.mxu0
    %vm437 = vcmask 7168
    %438 = vst.msk [vmem:[%s9] sm:$0xff] %vm437, %v434
    // Predicated region
    $region50: #{tpu_custom_call.1} parent=1 // pred_check
      _
    $region51: #{tpu_custom_call.1} parent=1 // pred_check_branch
      %440 = sbr.rel (0) target = $region53
    $region52: #{tpu_custom_call.1} parent=1 // pred_region
      _
    $region53: #{tpu_custom_call.1} parent=1 // pred_fallthru
      _
    // Predicated region
    $region54: #{tpu_custom_call.1} parent=1 // pred_check
      _
    $region55: #{tpu_custom_call.1} parent=1 // pred_check_branch
      %442 = sbr.rel (0) target = $region57
    $region56: #{tpu_custom_call.1} parent=1 // pred_region
      _
    $region57: #{tpu_custom_call.1} parent=1 // pred_fallthru
      _
    %443 = vsyncpa [#allocation4], 1
    %444 = vsyncpa [#allocation6], 1

</llo_original>
